<compile_context>
chip_gen: v6e
topology: v6e:2x2x1
jax: 0.10.0
libtpu: 0.0.40
codegen_flags: <defaults>
</compile_context>

<pallas_src>
import functools

import jax
import jax.numpy as jnp
from jax.experimental import pallas as pl
from jax.experimental.pallas import tpu as pltpu


def _attention_gate_kernel(tile_ref, w_ref, b_ref, wo_ref, bo_ref, out_ref,
                           *, cx, w2, tw):
    # tile_ref: (C, SLAB)  zero-padded, row-flattened [x; g] slab for one
    #                      (batch, row-tile); C = Cx + Cg, SLAB = tw + 2*(W+3)
    # w_ref   : (F, 9*C)   fused 3x3 conv weights (xcnn ++ gcnn), im2col order
    # b_ref   : (F, 1)     bg + bx (pre-summed)
    # wo_ref  : (F, 1)     1x1 conv weight
    # bo_ref  : (1, 1)     1x1 conv bias
    # out_ref : (cx, tw)   gated x, padded-width rows flattened into lanes

    # im2col: the 9 conv taps are static lane-offset windows of the flat slab;
    # stack them along sublanes -> (9*C, tw).  No reshapes, no relayouts.
    cols = jnp.concatenate(
        [tile_ref[:, di * w2 + dj: di * w2 + dj + tw]
         for di in range(3) for dj in range(3)],
        axis=0)

    # fused gcnn + xcnn as a single MXU matmul (K = 9*C)
    acc = jnp.dot(w_ref[...], cols, preferred_element_type=jnp.float32)
    acc = acc + b_ref[...]                        # (F, tw), bias over lanes
    acc = jnp.where(acc > 0, acc, 0.1 * acc)      # LeakyReLU(0.1)

    # 1x1 conv -> 1 channel: VPU multiply + cross-sublane reduce, then sigmoid
    gate = jnp.sum(acc * wo_ref[...], axis=0, keepdims=True) + bo_ref[...]
    gate = jax.nn.sigmoid(gate)                   # (1, tw)

    # gating multiply: x channels are the leading sublanes of the slab; the
    # center tap (di=dj=1) sits at lane offset w2 + 1.
    x_c = tile_ref[0:cx, w2 + 1: w2 + 1 + tw]     # (cx, tw)
    out_ref[...] = (x_c * gate).astype(out_ref.dtype)


def attention_gate(g, x, params, *, row_tile=8):
    """AttentionGate forward (PyTorch NCHW convention in and out).

    params = (wg, bg, wx, bx, wo, bo) in PyTorch Conv2d layouts:
      wg (F, Cg, 3, 3), bg (F,), wx (F, Cx, 3, 3), bx (F,),
      wo (1, F, 1, 1),  bo (1,).
    """
    wg, bg, wx, bx, wo, bo = params
    N, Cg, H, W = g.shape
    _, Cx, _, _ = x.shape
    F = wg.shape[0]
    C = Cx + Cg
    W2 = W + 2

    th = min(row_tile, H)
    while H % th:                      # row tile must divide H
        th -= 1
    n_tiles = H // th
    TW = th * W2                       # output lanes per tile (padded width)
    SLAB = TW + 2 * (W + 3)            # tile rows + 3x3 halo, flattened

    # --- fuse & pack weights (constant folding outside the kernel) ----------
    wcat = jnp.concatenate([wx, wg], axis=1)                    # (F, C, 3, 3)
    w_fused = jnp.transpose(wcat, (0, 2, 3, 1)).reshape(F, 9 * C)
    b_fused = (bg + bx).reshape(F, 1).astype(jnp.float32)
    wo_col = wo.reshape(1, F).T.astype(jnp.float32)             # (F, 1)
    bo_s = bo.reshape(1, 1).astype(jnp.float32)

    # --- zero-padded, row-flattened [x; g] slabs (stays channel-major) ------
    gx = jnp.concatenate([x, g], axis=1)                        # (N, C, H, W)
    gxp = jnp.pad(gx, ((0, 0), (0, 0), (1, 1), (1, 1)))         # (N, C, H+2, W+2)
    gxf = gxp.reshape(N, C, (H + 2) * W2)                       # flat spatial
    gxe = jnp.pad(gxf, ((0, 0), (0, 0), (1, 1)))                # halo guard
    tiles = jnp.stack(
        [gxe[:, :, t * TW: t * TW + SLAB] for t in range(n_tiles)], axis=1)
    # tiles: (N, n_tiles, C, SLAB) — tiny halo duplication, static slices only

    kernel = functools.partial(_attention_gate_kernel, cx=Cx, w2=W2, tw=TW)

    out_tiles = pl.pallas_call(
        kernel,
        out_shape=jax.ShapeDtypeStruct((N, n_tiles, Cx, TW), x.dtype),
        grid=(N, n_tiles),
        in_specs=[
            pl.BlockSpec((None, None, C, SLAB), lambda b, t: (b, t, 0, 0)),
            pl.BlockSpec((F, 9 * C), lambda b, t: (0, 0)),
            pl.BlockSpec((F, 1), lambda b, t: (0, 0)),
            pl.BlockSpec((F, 1), lambda b, t: (0, 0)),
            pl.BlockSpec((1, 1), lambda b, t: (0, 0)),
        ],
        out_specs=pl.BlockSpec((None, None, Cx, TW),
                               lambda b, t: (b, t, 0, 0)),
        compiler_params=pltpu.CompilerParams(
            dimension_semantics=("parallel", "parallel")),
    )(tiles, w_fused, b_fused, wo_col, bo_s)

    # (N, n_tiles, Cx, th*(W+2)) -> (N, Cx, H, W): drop the width zero-pad
    out = out_tiles.reshape(N, n_tiles, Cx, th, W2)
    out = jnp.transpose(out, (0, 2, 1, 3, 4)).reshape(N, Cx, H, W2)
    return out[..., 1:W + 1]


def reference_attention_gate(g, x, params):
    """Plain-JAX reference (lax conv, NCHW) for validation."""
    wg, bg, wx, bx, wo, bo = params
    dn = ('NCHW', 'OIHW', 'NCHW')
    gc = jax.lax.conv_general_dilated(g, wg, (1, 1), 'SAME',
                                      dimension_numbers=dn)
    gc = gc + bg[None, :, None, None]
    xc = jax.lax.conv_general_dilated(x, wx, (1, 1), 'SAME',
                                      dimension_numbers=dn)
    xc = xc + bx[None, :, None, None]
    a = xc + gc
    a = jnp.where(a > 0, a, 0.1 * a)
    o = jax.lax.conv_general_dilated(a, wo, (1, 1), 'SAME',
                                     dimension_numbers=dn)
    o = o + bo[None, :, None, None]
    return x * jax.nn.sigmoid(o)


def init_params(key, g_filters, x_filters, filters):
    k1, k2, k3, k4, k5, k6 = jax.random.split(key, 6)
    wg = jax.random.normal(k1, (filters, g_filters, 3, 3), jnp.float32) * 0.1
    wx = jax.random.normal(k2, (filters, x_filters, 3, 3), jnp.float32) * 0.1
    wo = jax.random.normal(k3, (1, filters, 1, 1), jnp.float32) * 0.1
    bg = jax.random.normal(k4, (filters,), jnp.float32) * 0.05
    bx = jax.random.normal(k5, (filters,), jnp.float32) * 0.05
    bo = jax.random.normal(k6, (1,), jnp.float32) * 0.05
    return wg, bg, wx, bx, wo, bo


if __name__ == "__main__":
    N, Cg, Cx, F, H, W = 2, 4, 4, 8, 16, 16

    key = jax.random.PRNGKey(0)
    kg, kx, kp = jax.random.split(key, 3)
    g = jax.random.normal(kg, (N, Cg, H, W), jnp.float32)   # NCHW like PyTorch
    x = jax.random.normal(kx, (N, Cx, H, W), jnp.float32)
    params = init_params(kp, Cg, Cx, F)

    out = jax.block_until_ready(attention_gate(g, x, params))
    ref = jax.block_until_ready(reference_attention_gate(g, x, params))

    assert out.shape == x.shape
    max_err = float(jnp.max(jnp.abs(out - ref)))
    assert jnp.allclose(out, ref, atol=1e-4, rtol=1e-4), max_err

    print("KERNEL_OK")
</pallas_src>

<mosaic_0001>
module attributes {stable_mosaic.version = 11 : i64} {
  func.func @_attention_gate_kernel(%arg0: i32, %arg1: i32, %arg2: memref<1x1x8x182xf32, #tpu.memory_space<vmem>>, %arg3: memref<8x72xf32, #tpu.memory_space<vmem>>, %arg4: memref<8x1xf32, #tpu.memory_space<vmem>>, %arg5: memref<8x1xf32, #tpu.memory_space<vmem>>, %arg6: memref<1x1xf32, #tpu.memory_space<vmem>>, %arg7: memref<1x1x4x144xf32, #tpu.memory_space<vmem>>) attributes {dimension_semantics = [#tpu.dimension_semantics<parallel>, #tpu.dimension_semantics<parallel>], iteration_bounds = array<i64: 2, 2>, scalar_prefetch = 0 : i64, scratch_operands = 0 : i64, tpu.core_type = #tpu.core_type<tc>, window_params = [{transform_indices = @transform_0, window_bounds = array<i64: 1, 1, 8, 182>}, {pipeline_mode = #tpu.pipeline_mode<synchronous>, transform_indices = @transform_1, window_bounds = array<i64: 8, 72>}, {pipeline_mode = #tpu.pipeline_mode<synchronous>, transform_indices = @transform_2, window_bounds = array<i64: 8, 1>}, {pipeline_mode = #tpu.pipeline_mode<synchronous>, transform_indices = @transform_3, window_bounds = array<i64: 8, 1>}, {pipeline_mode = #tpu.pipeline_mode<synchronous>, transform_indices = @transform_4, window_bounds = array<i64: 1, 1>}, {transform_indices = @transform_5, window_bounds = array<i64: 1, 1, 4, 144>}]} {
    %c0 = arith.constant 0 : index
    %c0_0 = arith.constant 0 : index
    %c0_1 = arith.constant 0 : index
    %c0_2 = arith.constant 0 : index
    %0 = vector.load %arg2[%c0, %c0_0, %c0_1, %c0_2] : memref<1x1x8x182xf32, #tpu.memory_space<vmem>>, vector<1x1x8x144xf32>
    %1 = vector.shape_cast %0 : vector<1x1x8x144xf32> to vector<8x144xf32>
    %c0_3 = arith.constant 0 : index
    %c0_4 = arith.constant 0 : index
    %c0_5 = arith.constant 0 : index
    %c1 = arith.constant 1 : index
    %2 = vector.load %arg2[%c0_3, %c0_4, %c0_5, %c1] : memref<1x1x8x182xf32, #tpu.memory_space<vmem>>, vector<1x1x8x144xf32>
    %3 = vector.shape_cast %2 : vector<1x1x8x144xf32> to vector<8x144xf32>
    %c0_6 = arith.constant 0 : index
    %c0_7 = arith.constant 0 : index
    %c0_8 = arith.constant 0 : index
    %c2 = arith.constant 2 : index
    %4 = vector.load %arg2[%c0_6, %c0_7, %c0_8, %c2] : memref<1x1x8x182xf32, #tpu.memory_space<vmem>>, vector<1x1x8x144xf32>
    %5 = vector.shape_cast %4 : vector<1x1x8x144xf32> to vector<8x144xf32>
    %c0_9 = arith.constant 0 : index
    %c0_10 = arith.constant 0 : index
    %c0_11 = arith.constant 0 : index
    %c18 = arith.constant 18 : index
    %6 = vector.load %arg2[%c0_9, %c0_10, %c0_11, %c18] : memref<1x1x8x182xf32, #tpu.memory_space<vmem>>, vector<1x1x8x144xf32>
    %7 = vector.shape_cast %6 : vector<1x1x8x144xf32> to vector<8x144xf32>
    %c0_12 = arith.constant 0 : index
    %c0_13 = arith.constant 0 : index
    %c0_14 = arith.constant 0 : index
    %c19 = arith.constant 19 : index
    %8 = vector.load %arg2[%c0_12, %c0_13, %c0_14, %c19] : memref<1x1x8x182xf32, #tpu.memory_space<vmem>>, vector<1x1x8x144xf32>
    %9 = vector.shape_cast %8 : vector<1x1x8x144xf32> to vector<8x144xf32>
    %c0_15 = arith.constant 0 : index
    %c0_16 = arith.constant 0 : index
    %c0_17 = arith.constant 0 : index
    %c20 = arith.constant 20 : index
    %10 = vector.load %arg2[%c0_15, %c0_16, %c0_17, %c20] : memref<1x1x8x182xf32, #tpu.memory_space<vmem>>, vector<1x1x8x144xf32>
    %11 = vector.shape_cast %10 : vector<1x1x8x144xf32> to vector<8x144xf32>
    %c0_18 = arith.constant 0 : index
    %c0_19 = arith.constant 0 : index
    %c0_20 = arith.constant 0 : index
    %c36 = arith.constant 36 : index
    %12 = vector.load %arg2[%c0_18, %c0_19, %c0_20, %c36] : memref<1x1x8x182xf32, #tpu.memory_space<vmem>>, vector<1x1x8x144xf32>
    %13 = vector.shape_cast %12 : vector<1x1x8x144xf32> to vector<8x144xf32>
    %c0_21 = arith.constant 0 : index
    %c0_22 = arith.constant 0 : index
    %c0_23 = arith.constant 0 : index
    %c37 = arith.constant 37 : index
    %14 = vector.load %arg2[%c0_21, %c0_22, %c0_23, %c37] : memref<1x1x8x182xf32, #tpu.memory_space<vmem>>, vector<1x1x8x144xf32>
    %15 = vector.shape_cast %14 : vector<1x1x8x144xf32> to vector<8x144xf32>
    %c0_24 = arith.constant 0 : index
    %c0_25 = arith.constant 0 : index
    %c0_26 = arith.constant 0 : index
    %c38 = arith.constant 38 : index
    %16 = vector.load %arg2[%c0_24, %c0_25, %c0_26, %c38] : memref<1x1x8x182xf32, #tpu.memory_space<vmem>>, vector<1x1x8x144xf32>
    %17 = vector.shape_cast %16 : vector<1x1x8x144xf32> to vector<8x144xf32>
    %18 = tpu.concatenate %1, %3, %5, %7, %9, %11, %13, %15, %17 in 0 : vector<8x144xf32>, vector<8x144xf32>, vector<8x144xf32>, vector<8x144xf32>, vector<8x144xf32>, vector<8x144xf32>, vector<8x144xf32>, vector<8x144xf32>, vector<8x144xf32> -> vector<72x144xf32>
    %c0_27 = arith.constant 0 : index
    %c0_28 = arith.constant 0 : index
    %19 = vector.load %arg3[%c0_27, %c0_28] : memref<8x72xf32, #tpu.memory_space<vmem>>, vector<8x72xf32>
    %cst = arith.constant dense<0.000000e+00> : vector<8x144xf32>
    %20 = tpu.matmul %19, %18, %cst {dimension_numbers = #tpu.dot_dimension_numbers<[1], [0], [0], [1], [0, 0, 1, 1], [], []>} : vector<8x72xf32>, vector<72x144xf32>, vector<8x144xf32> -> vector<8x144xf32>
    %c0_29 = arith.constant 0 : index
    %c0_30 = arith.constant 0 : index
    %21 = vector.load %arg4[%c0_29, %c0_30] : memref<8x1xf32, #tpu.memory_space<vmem>>, vector<8x1xf32>
    %22 = vector.broadcast %21 : vector<8x1xf32> to vector<8x144xf32>
    %23 = arith.addf %20, %22 : vector<8x144xf32>
    %cst_31 = arith.constant 0.000000e+00 : f32
    %24 = vector.broadcast %cst_31 : f32 to vector<8x144xf32>
    %25 = arith.cmpf ogt, %23, %24 : vector<8x144xf32>
    %cst_32 = arith.constant 1.000000e-01 : f32
    %26 = vector.broadcast %cst_32 : f32 to vector<8x144xf32>
    %27 = arith.mulf %26, %23 : vector<8x144xf32>
    %28 = arith.select %25, %23, %27 : vector<8x144xi1>, vector<8x144xf32>
    %c0_33 = arith.constant 0 : index
    %c0_34 = arith.constant 0 : index
    %29 = vector.load %arg5[%c0_33, %c0_34] : memref<8x1xf32, #tpu.memory_space<vmem>>, vector<8x1xf32>
    %30 = vector.broadcast %29 : vector<8x1xf32> to vector<8x144xf32>
    %31 = arith.mulf %28, %30 : vector<8x144xf32>
    %cst_35 = arith.constant dense<0.000000e+00> : vector<144xf32>
    %32 = vector.multi_reduction <add>, %31, %cst_35 [0] : vector<8x144xf32> to vector<144xf32>
    %33 = vector.shape_cast %32 : vector<144xf32> to vector<1x144xf32>
    %c0_36 = arith.constant 0 : index
    %c0_37 = arith.constant 0 : index
    %34 = vector.load %arg6[%c0_36, %c0_37] : memref<1x1xf32, #tpu.memory_space<vmem>>, vector<1x1xf32>
    %35 = vector.broadcast %34 : vector<1x1xf32> to vector<1x144xf32>
    %36 = arith.addf %33, %35 : vector<1x144xf32>
    %37 = arith.negf %36 : vector<1x144xf32>
    %38 = math.exp %37 : vector<1x144xf32>
    %cst_38 = arith.constant 1.000000e+00 : f32
    %39 = vector.broadcast %cst_38 : f32 to vector<1x144xf32>
    %40 = arith.addf %39, %38 : vector<1x144xf32>
    %41 = arith.divf %39, %40 : vector<1x144xf32>
    %c0_39 = arith.constant 0 : index
    %c0_40 = arith.constant 0 : index
    %c0_41 = arith.constant 0 : index
    %c19_42 = arith.constant 19 : index
    %42 = vector.load %arg2[%c0_39, %c0_40, %c0_41, %c19_42] : memref<1x1x8x182xf32, #tpu.memory_space<vmem>>, vector<1x1x4x144xf32>
    %43 = vector.shape_cast %42 : vector<1x1x4x144xf32> to vector<4x144xf32>
    %44 = vector.broadcast %41 : vector<1x144xf32> to vector<4x144xf32>
    %45 = arith.mulf %43, %44 : vector<4x144xf32>
    %c0_43 = arith.constant 0 : index
    %c0_44 = arith.constant 0 : index
    %c0_45 = arith.constant 0 : index
    %c0_46 = arith.constant 0 : index
    %46 = vector.load %arg7[%c0_43, %c0_44, %c0_45, %c0_46] : memref<1x1x4x144xf32, #tpu.memory_space<vmem>>, vector<1x1x4x144xf32>
    %47 = vector.shape_cast %46 : vector<1x1x4x144xf32> to vector<4x144xf32>
    %48 = vector.shape_cast %45 : vector<4x144xf32> to vector<1x1x4x144xf32>
    tpu.vector_store %arg7[%c0_43, %c0_44, %c0_45, %c0_46], %48 {strides = array<i32>} : memref<1x1x4x144xf32, #tpu.memory_space<vmem>>, vector<1x1x4x144xf32>,
    return
  }
  func.func @transform_0(%arg0: i32, %arg1: i32) -> (i32, i32, i32, i32) {
    %c0_i32 = arith.constant 0 : i32
    %c0_i32_0 = arith.constant 0 : i32
    %c0_i32_1 = arith.constant 0 : i32
    return %arg0, %arg1, %c0_i32, %c0_i32_0 : i32, i32, i32, i32
  }
  func.func @transform_1(%arg0: i32, %arg1: i32) -> (i32, i32) {
    %c0_i32 = arith.constant 0 : i32
    %c0_i32_0 = arith.constant 0 : i32
    %c0_i32_1 = arith.constant 0 : i32
    return %c0_i32, %c0_i32_0 : i32, i32
  }
  func.func @transform_2(%arg0: i32, %arg1: i32) -> (i32, i32) {
    %c0_i32 = arith.constant 0 : i32
    %c0_i32_0 = arith.constant 0 : i32
    %c0_i32_1 = arith.constant 0 : i32
    return %c0_i32, %c0_i32_0 : i32, i32
  }
  func.func @transform_3(%arg0: i32, %arg1: i32) -> (i32, i32) {
    %c0_i32 = arith.constant 0 : i32
    %c0_i32_0 = arith.constant 0 : i32
    %c0_i32_1 = arith.constant 0 : i32
    return %c0_i32, %c0_i32_0 : i32, i32
  }
  func.func @transform_4(%arg0: i32, %arg1: i32) -> (i32, i32) {
    %c0_i32 = arith.constant 0 : i32
    %c0_i32_0 = arith.constant 0 : i32
    %c0_i32_1 = arith.constant 0 : i32
    return %c0_i32, %c0_i32_0 : i32, i32
  }
  func.func @transform_5(%arg0: i32, %arg1: i32) -> (i32, i32, i32, i32) {
    %c0_i32 = arith.constant 0 : i32
    %c0_i32_0 = arith.constant 0 : i32
    %c0_i32_1 = arith.constant 0 : i32
    return %arg0, %arg1, %c0_i32, %c0_i32_0 : i32, i32, i32, i32
  }
}

</mosaic_0001>

<llo_original>
// kernel: tpu_custom_call.1
$region0: #{tpu_custom_call.1}
  #allocation0 [shape = 'u32[]', space=smem, size = 0x4, offset = 0x4, fixed_abs, tag = 'smem constant byte address 0x4 - core index']
  #allocation1 [shape = 'u32[144,128]{1,0:T(1,128)}', space=vmem, size = 0x12000, scoped, tag = 'internal scratch']
  #allocation2 [shape = 'f32[1,1]{1,0:T(1,128)S(1)}', space=vmem, size = 0x200, scoped, tag = 'scoped memory for tpu_custom_call.1']
  %s0 = inlined_call_operand.hbm [shape: f32[2,2,8,182], index: 0, kind: input, shape index: {}]
  %s1 = inlined_call_operand.vmem [shape: f32[8,72], index: 1, kind: input, shape index: {}]
  %s2 = inlined_call_operand.vmem [shape: f32[8,1], index: 2, kind: input, shape index: {}]
  %s3 = inlined_call_operand.vmem [shape: f32[8,1], index: 3, kind: input, shape index: {}]
  %s4 = inlined_call_operand.<no memory space> [shape: f32[1,1], index: 4, kind: input, shape index: {}]
  %s5 = inlined_call_operand.hbm [shape: f32[2,2,4,144], index: 5, kind: output, shape index: {}]
  %s6 = sld [smem:[#allocation0]]
  $region57: #{tpu_custom_call.1} parent=0
    _
  %s8 = ssub.s32 1, %s6
  %s9 = scalar_select 0, %s8, %s6
  %v10 = vstv %s4
  %11 = vst [vmem:[#allocation2] sm:$0x1] %v10
  $region1: #{tpu_custom_call.1} parent=0
    #allocation3 [shape = 'u8[16384]{0}', space=vmem, size = 0x4000, scoped, tag = 'input window, operand 0']
    #allocation4 [shape = 's32[2]{0}', space=sflag, size = 0x8, scoped, tag = 'scoped memory for tpu_custom_call.1']
    #allocation5 [shape = 's32[2]{0}', space=sflag, size = 0x8, scoped, tag = 'scoped memory for tpu_custom_call.1']
    #allocation6 [shape = 'u8[8192]{0}', space=vmem, size = 0x2000, scoped, tag = 'output window, operand 0']
    %12 = vsyncpa [#allocation4], 0
    %s13 = scalar_lea.sflag [#allocation4], 1
    %14 = vsyncpa %s13, 0
    %15 = vsyncpa [#allocation5], 0
    %s16 = scalar_lea.sflag [#allocation5], 1
    %17 = vsyncpa %s16, 0
    loop: start=0, step=1, limit=6
    $region2: #{tpu_custom_call.1} parent=1 // loop_pre_header
      _
    $region3: #{tpu_custom_call.1} parent=1 // loop_header
      %s19 = sphi 0, %s23
      %p20 = scmp.ge.s32.totalorder %s19, 6
      %s26 = sphi 0, %s38
      %s27 = sphi 0, %s34
      %s28 = sphi 0, %s26
      %s29 = sphi 0, %s27
      %s30 = sphi 0, %s28
      %s31 = sphi 0, %s29
      %s43 = sphi 0, %s45
      %s46 = sphi 0, %s43
      %s47 = sphi 0, %s46
      %s63 = sphi 0, %s47
      %s67 = sphi 0, %s67
      %s69 = sphi 0, %s67
      %s70 = sphi 0, %s69
      %s84 = sphi 0, %s70
      %s88 = sphi 0, %s88
      %s90 = sphi 0, %s88
      %s91 = sphi 0, %s90
      %s105 = sphi 0, %s91
      %s109 = sphi 0, %s109
      %s111 = sphi 0, %s109
      %s112 = sphi 0, %s111
      %s126 = sphi 0, %s112
      %s130 = sphi 0, %s130
      %s132 = sphi 0, %s130
      %s133 = sphi 0, %s132
      %s147 = sphi 0, %s133
      %s155 = sphi 0, %s157
      %s158 = sphi 0, %s155
      %s159 = sphi 0, %s158
      %s175 = sphi 0, %s159
    $region4: #{tpu_custom_call.1} parent=1 // loop_header_branch
      %22 = sbr.rel (%p20) target = $region8
    $region5: #{tpu_custom_call.1} parent=1 // loop_body
      %s24 = ssub.s32 %s19, 1
      %s25 = ssub.s32 %s19, 2
      %s32 = sadd.s32 1, %s27
      %p33 = scmp.ge.s32.totalorder %s32, 2
      %s34 = scalar_select %p33, 0, %s32
      %s35 = sadd.s32 1, %s26
      %s36 = scalar_select %p33, %s35, %s26
      %p37 = scmp.ge.s32.totalorder %s36, 2
      %s38 = scalar_select %p37, 0, %s36
      %s39 = ssub.s32 %s26, %s38
      %s40 = ssub.s32 %s27, %s34
      %s41 = sor.u32 %s39, %s40
      %p42 = scmp.eq.s32.totalorder %s41, 0
      %s44 = sadd.s32 %s43, 1
      %s45 = scalar_select %p42, %s43, %s44
      %p48 = pneg %p42
      %p49 = scmp.eq.s32.totalorder %s19, 3
      %p50 = por %p48, %p49
      %p51 = scmp.ne.s32.totalorder %s43, %s46
      %p52 = scmp.eq.s32.totalorder %s19, 0
      %p53 = por %p51, %p52
      %p54 = scmp.ne.s32.totalorder %s43, %s46
      %p55 = scmp.eq.s32.totalorder %s24, 3
      %p56 = por %p54, %p55
      %p57 = scmp.ne.s32.totalorder %s46, %s47
      %p58 = scmp.eq.s32.totalorder %s24, 0
      %p59 = por %p57, %p58
      %p60 = scmp.ne.s32.totalorder %s46, %s47
      %p61 = scmp.eq.s32.totalorder %s25, 3
      %p62 = por %p60, %p61
      %p64 = scmp.ne.s32.totalorder %s47, %s63
      %p65 = scmp.eq.s32.totalorder %s25, 0
      %p66 = por %p64, %p65
      %s68 = sadd.s32 %s67, 1
      %p71 = scmp.eq.s32.totalorder %s19, 3
      %p72 = scmp.ne.s32.totalorder %s67, %s69
      %p73 = scmp.eq.s32.totalorder %s19, 0
      %p74 = por %p72, %p73
      %p75 = scmp.ne.s32.totalorder %s67, %s69
      %p76 = scmp.eq.s32.totalorder %s24, 3
      %p77 = por %p75, %p76
      %p78 = scmp.ne.s32.totalorder %s69, %s70
      %p79 = scmp.eq.s32.totalorder %s24, 0
      %p80 = por %p78, %p79
      %p81 = scmp.ne.s32.totalorder %s69, %s70
      %p82 = scmp.eq.s32.totalorder %s25, 3
      %p83 = por %p81, %p82
      %p85 = scmp.ne.s32.totalorder %s70, %s84
      %p86 = scmp.eq.s32.totalorder %s25, 0
      %p87 = por %p85, %p86
      %s89 = sadd.s32 %s88, 1
      %p92 = scmp.eq.s32.totalorder %s19, 3
      %p93 = scmp.ne.s32.totalorder %s88, %s90
      %p94 = scmp.eq.s32.totalorder %s19, 0
      %p95 = por %p93, %p94
      %p96 = scmp.ne.s32.totalorder %s88, %s90
      %p97 = scmp.eq.s32.totalorder %s24, 3
      %p98 = por %p96, %p97
      %p99 = scmp.ne.s32.totalorder %s90, %s91
      %p100 = scmp.eq.s32.totalorder %s24, 0
      %p101 = por %p99, %p100
      %p102 = scmp.ne.s32.totalorder %s90, %s91
      %p103 = scmp.eq.s32.totalorder %s25, 3
      %p104 = por %p102, %p103
      %p106 = scmp.ne.s32.totalorder %s91, %s105
      %p107 = scmp.eq.s32.totalorder %s25, 0
      %p108 = por %p106, %p107
      %s110 = sadd.s32 %s109, 1
      %p113 = scmp.eq.s32.totalorder %s19, 3
      %p114 = scmp.ne.s32.totalorder %s109, %s111
      %p115 = scmp.eq.s32.totalorder %s19, 0
      %p116 = por %p114, %p115
      %p117 = scmp.ne.s32.totalorder %s109, %s111
      %p118 = scmp.eq.s32.totalorder %s24, 3
      %p119 = por %p117, %p118
      %p120 = scmp.ne.s32.totalorder %s111, %s112
      %p121 = scmp.eq.s32.totalorder %s24, 0
      %p122 = por %p120, %p121
      %p123 = scmp.ne.s32.totalorder %s111, %s112
      %p124 = scmp.eq.s32.totalorder %s25, 3
      %p125 = por %p123, %p124
      %p127 = scmp.ne.s32.totalorder %s112, %s126
      %p128 = scmp.eq.s32.totalorder %s25, 0
      %p129 = por %p127, %p128
      %s131 = sadd.s32 %s130, 1
      %p134 = scmp.eq.s32.totalorder %s19, 3
      %p135 = scmp.ne.s32.totalorder %s130, %s132
      %p136 = scmp.eq.s32.totalorder %s19, 0
      %p137 = por %p135, %p136
      %p138 = scmp.ne.s32.totalorder %s130, %s132
      %p139 = scmp.eq.s32.totalorder %s24, 3
      %p140 = por %p138, %p139
      %p141 = scmp.ne.s32.totalorder %s132, %s133
      %p142 = scmp.eq.s32.totalorder %s24, 0
      %p143 = por %p141, %p142
      %p144 = scmp.ne.s32.totalorder %s132, %s133
      %p145 = scmp.eq.s32.totalorder %s25, 3
      %p146 = por %p144, %p145
      %p148 = scmp.ne.s32.totalorder %s133, %s147
      %p149 = scmp.eq.s32.totalorder %s25, 0
      %p150 = por %p148, %p149
      %s151 = ssub.s32 %s26, %s38
      %s152 = ssub.s32 %s27, %s34
      %s153 = sor.u32 %s151, %s152
      %p154 = scmp.eq.s32.totalorder %s153, 0
      %s156 = sadd.s32 %s155, 1
      %s157 = scalar_select %p154, %s155, %s156
      %p160 = pneg %p154
      %p161 = scmp.eq.s32.totalorder %s19, 3
      %p162 = por %p160, %p161
      %p163 = scmp.ne.s32.totalorder %s155, %s158
      %p164 = scmp.eq.s32.totalorder %s19, 0
      %p165 = por %p163, %p164
      %p166 = scmp.ne.s32.totalorder %s155, %s158
      %p167 = scmp.eq.s32.totalorder %s24, 3
      %p168 = por %p166, %p167
      %p169 = scmp.ne.s32.totalorder %s158, %s159
      %p170 = scmp.eq.s32.totalorder %s24, 0
      %p171 = por %p169, %p170
      %p172 = scmp.ne.s32.totalorder %s158, %s159
      %p173 = scmp.eq.s32.totalorder %s25, 3
      %p174 = por %p172, %p173
      %p176 = scmp.ne.s32.totalorder %s159, %s175
      %p177 = scmp.eq.s32.totalorder %s25, 0
      %p178 = por %p176, %p177
      %p179 = scmp.le.s32.totalorder 1, %s19
      %p180 = scmp.lt.s32.totalorder %s19, 5
      %p181 = pnand %p179, %p180
      %p182 = pneg %p181
      // Predicated region
      $region9: #{tpu_custom_call.1} parent=5 // pred_check
        _
      $region10: #{tpu_custom_call.1} parent=5 // pred_check_branch
        %184 = sbr.rel (%p181) target = $region12
      $region11: #{tpu_custom_call.1} parent=5 // pred_region
        %s185 = ssub.s32 %s19, 1
        // Predicated region
        $region13: #{tpu_custom_call.1} parent=11 // pred_check
          %p186 = pneg %p80
        $region14: #{tpu_custom_call.1} parent=11 // pred_check_branch
          %188 = sbr.rel (%p186) target = $region16
        $region15: #{tpu_custom_call.1} parent=11 // pred_region
          _
        $region16: #{tpu_custom_call.1} parent=11 // pred_fallthru
          _
        // Predicated region
        $region17: #{tpu_custom_call.1} parent=11 // pred_check
          %p189 = pneg %p101
        $region18: #{tpu_custom_call.1} parent=11 // pred_check_branch
          %191 = sbr.rel (%p189) target = $region20
        $region19: #{tpu_custom_call.1} parent=11 // pred_region
          _
        $region20: #{tpu_custom_call.1} parent=11 // pred_fallthru
          _
        // Predicated region
        $region21: #{tpu_custom_call.1} parent=11 // pred_check
          %p192 = pneg %p122
        $region22: #{tpu_custom_call.1} parent=11 // pred_check_branch
          %194 = sbr.rel (%p192) target = $region24
        $region23: #{tpu_custom_call.1} parent=11 // pred_region
          _
        $region24: #{tpu_custom_call.1} parent=11 // pred_fallthru
          _
        // Predicated region
        $region25: #{tpu_custom_call.1} parent=11 // pred_check
          %p195 = pneg %p143
        $region26: #{tpu_custom_call.1} parent=11 // pred_check_branch
          %197 = sbr.rel (%p195) target = $region28
        $region27: #{tpu_custom_call.1} parent=11 // pred_region
          _
        $region28: #{tpu_custom_call.1} parent=11 // pred_fallthru
          _
      $region12: #{tpu_custom_call.1} parent=5 // pred_fallthru
        _
      %p198 = scmp.lt.s32.totalorder %s19, 4
      // Predicated region
      $region29: #{tpu_custom_call.1} parent=5 // pred_check
        %p199 = pneg %p198
      $region30: #{tpu_custom_call.1} parent=5 // pred_check_branch
        %201 = sbr.rel (%p199) target = $region32
      $region31: #{tpu_custom_call.1} parent=5 // pred_region
        // Predicated region
        $region33: #{tpu_custom_call.1} parent=31 // pred_check
          %p202 = pneg %p53
        $region34: #{tpu_custom_call.1} parent=31 // pred_check_branch
          %204 = sbr.rel (%p202) target = $region36
        $region35: #{tpu_custom_call.1} parent=31 // pred_region
          %s205 = sand.u32 %s43, 1
          %s206 = scalar_lea.sflag [#allocation4], %s205
          %s207 = sand.u32 %s43, 1
          %s208 = smul.addr %s207, 16
          %s209 = scalar_lea.vmem [#allocation3], %s208
          %s211 = ssub.s32 256, 256
          %212 = vsyncadd %s206, %s211
          %s213 = smul.addr %s27, 2
          %s214 = smul.addr %s26, 4
          %s215 = sadd.s32 %s213, %s214
          %s216 = smul.addr %s215, 128
          %s217 = scalar_lea.hbm %s0, %s216
          %s219 = sshll.u32 %s209, 4
          %s220 = int_to_ptr.vmem [resolvable:$true] %s219
          %222 = dma.hbm_to_vmem [thread:$0]  %s217, 256, %s220, %s206
        $region36: #{tpu_custom_call.1} parent=31 // pred_fallthru
          _
      $region32: #{tpu_custom_call.1} parent=5 // pred_fallthru
        _
      %p223 = scmp.le.s32.totalorder 1, %s19
      %p224 = scmp.lt.s32.totalorder %s19, 5
      %p225 = pnand %p223, %p224
      %p226 = pneg %p225
      // Predicated region
      $region37: #{tpu_custom_call.1} parent=5 // pred_check
        _
      $region38: #{tpu_custom_call.1} parent=5 // pred_check_branch
        %228 = sbr.rel (%p225) target = $region40
      $region39: #{tpu_custom_call.1} parent=5 // pred_region
        %s229 = ssub.s32 %s19, 1
        %s230 = sand.u32 %s46, 1
        %s231 = scalar_lea.sflag [#allocation4], %s230
        %s232 = sand.u32 %s46, 1
        %s233 = smul.addr %s232, 16
        %s234 = scalar_lea.vmem [#allocation3], %s233
        // Predicated region
        $region41: #{tpu_custom_call.1} parent=39 // pred_check
          %p235 = pneg %p59
        $region42: #{tpu_custom_call.1} parent=39 // pred_check_branch
          %237 = sbr.rel (%p235) target = $region44
        $region43: #{tpu_custom_call.1} parent=39 // pred_region
          %238 = dma.done %s231, 256
        $region44: #{tpu_custom_call.1} parent=39 // pred_fallthru
          _
        %s239 = sand.u32 %s46, 1
        %s240 = scalar_lea.sflag [#allocation4], %s239
        %s241 = sand.u32 %s46, 1
        %s242 = smul.addr %s241, 16
        %s243 = scalar_lea.vmem [#allocation3], %s242
        %p244 = pneg %p59
        %p245 = pneg %p56
        %p246 = pneg %p80
        %p247 = pneg %p77
        %p248 = pneg %p101
        %p249 = pneg %p98
        %p250 = pneg %p122
        %p251 = pneg %p119
        %p252 = pneg %p143
        %p253 = pneg %p140
        %p254 = pneg %p171
        %p255 = pneg %p168
        %s256 = sand.u32 %s158, 1
        %s257 = scalar_lea.sflag [#allocation5], %s256
        %s258 = sand.u32 %s158, 1
        %s259 = smul.addr %s258, 8
        %s260 = scalar_lea.vmem [#allocation6], %s259
        %v261 = vld [vmem:[%s234] sm:$0xff]
        %v262 = vld [vmem:[%s234 + $0x8] sm:$0xff]
        %265 = vrot.lane.b32.xlu0 %v261, 127
        %v266 = vpop.permute.xlu0 %265
        %267 = vrot.lane.b32.xlu0 %v262, 127
        %v268 = vpop.permute.xlu0 %267
        %vm269 = vcmask 1039360
        %v270 = vsel %vm269, %v266, %v268
        %273 = vrot.lane.b32.xlu0 %v261, 126
        %v274 = vpop.permute.xlu0 %273
        %275 = vrot.lane.b32.xlu0 %v262, 126
        %v276 = vpop.permute.xlu0 %275
        %vm277 = vcmask 1031168
        %v278 = vsel %vm277, %v274, %v276
        %281 = vrot.lane.b32.xlu0 %v261, 110
        %v282 = vpop.permute.xlu0 %281
        %283 = vrot.lane.b32.xlu0 %v262, 110
        %v284 = vpop.permute.xlu0 %283
        %vm285 = vcmask 900096
        %v286 = vsel %vm285, %v282, %v284
        %289 = vrot.lane.b32.xlu0 %v261, 109
        %v290 = vpop.permute.xlu0 %289
        %291 = vrot.lane.b32.xlu0 %v262, 109
        %v292 = vpop.permute.xlu0 %291
        %vm293 = vcmask 891904
        %v294 = vsel %vm293, %v290, %v292
        %297 = vrot.lane.b32.xlu0 %v261, 108
        %v298 = vpop.permute.xlu0 %297
        %299 = vrot.lane.b32.xlu0 %v262, 108
        %v300 = vpop.permute.xlu0 %299
        %vm301 = vcmask 883712
        %v302 = vsel %vm301, %v298, %v300
        %305 = vrot.lane.b32.xlu0 %v261, 92
        %v306 = vpop.permute.xlu0 %305
        %307 = vrot.lane.b32.xlu0 %v262, 92
        %v308 = vpop.permute.xlu0 %307
        %vm309 = vcmask 752640
        %v310 = vsel %vm309, %v306, %v308
        %313 = vrot.lane.b32.xlu0 %v261, 91
        %v314 = vpop.permute.xlu0 %313
        %315 = vrot.lane.b32.xlu0 %v262, 91
        %v316 = vpop.permute.xlu0 %315
        %vm317 = vcmask 744448
        %v318 = vsel %vm317, %v314, %v316
        %321 = vrot.lane.b32.xlu0 %v261, 90
        %v322 = vpop.permute.xlu0 %321
        %323 = vrot.lane.b32.xlu0 %v262, 90
        %v324 = vpop.permute.xlu0 %323
        %vm325 = vcmask 736256
        %v326 = vsel %vm325, %v322, %v324
        %v329 = vld [vmem:[%s1] sm:$0xff]
        %v330 = vld [vmem:[%s2] sm:$0xff]
        %332 = vset.pattern.permute.xlu0 0
        %333 = vperm.xlu0 %332, %v330
        %v334 = vpop.permute.xlu0 %333
        %vm336 = vcmask 588800
        %v338 = vsel %vm336, %v329, 0
        %340 = vmatprep.subr.mxu0 0.0
        %341 = vmatpush1.msra.mxu0 0.0
        %342 = vmatprep.subr.mxu0 0.0
        %343 = vmatpush1.msra.mxu0 0.0
        %344 = vmatprep.subr.mxu0 0.0
        %345 = vmatpush1.msra.mxu0 0.0
        %346 = vmatprep.subr.mxu0 0.0
        %347 = vmatpush1.msra.mxu0 0.0
        %348 = vmatprep.subr.mxu0 0.0
        %349 = vmatpush1.msra.mxu0 0.0
        %350 = vmatprep.subr.mxu0 0.0
        %351 = vmatpush1.msra.mxu0 0.0
        %352 = vmatprep.subr.mxu0 0.0
        %353 = vmatpush1.msra.mxu0 0.0
        %354 = vmatprep.subr.mxu0 %v324
        %355 = vmatpush1.msra.mxu0 %v326
        %356 = vmatprep.subr.mxu0 %v316
        %357 = vmatpush1.msra.mxu0 %v318
        %358 = vmatprep.subr.mxu0 %v308
        %359 = vmatpush1.msra.mxu0 %v310
        %360 = vmatprep.subr.mxu0 %v300
        %361 = vmatpush1.msra.mxu0 %v302
        %362 = vmatprep.subr.mxu0 %v292
        %363 = vmatpush1.msra.mxu0 %v294
        %364 = vmatprep.subr.mxu0 %v284
        %365 = vmatpush1.msra.mxu0 %v286
        %366 = vmatprep.subr.mxu0 %v276
        %367 = vmatpush1.msra.mxu0 %v278
        %368 = vmatprep.subr.mxu0 %v268
        %369 = vmatpush1.msra.mxu0 %v270
        %370 = vmatprep.subr.mxu0 %v262
        %371 = vmatpush1.msra.mxu0 %v261
        %372 = vmatprep.subr.mxu0 0.0
        %373 = vmatpush2.msra.mxu0 0.0
        %374 = vmatprep.subr.mxu0 0.0
        %375 = vmatpush2.msra.mxu0 0.0
        %376 = vmatprep.subr.mxu0 0.0
        %377 = vmatpush2.msra.mxu0 0.0
        %378 = vmatprep.subr.mxu0 0.0
        %379 = vmatpush2.msra.mxu0 0.0
        %380 = vmatprep.subr.mxu0 0.0
        %381 = vmatpush2.msra.mxu0 0.0
        %382 = vmatprep.subr.mxu0 0.0
        %383 = vmatpush2.msra.mxu0 0.0
        %384 = vmatprep.subr.mxu0 0.0
        %385 = vmatpush2.msra.mxu0 0.0
        %386 = vmatprep.subr.mxu0 0.0
        %387 = vmatpush2.msra.mxu0 0.0
        %388 = vmatprep.subr.mxu0 0.0
        %389 = vmatpush2.msra.mxu0 0.0
        %390 = vmatprep.subr.mxu0 0.0
        %391 = vmatpush2.msra.mxu0 0.0
        %392 = vmatprep.subr.mxu0 0.0
        %393 = vmatpush2.msra.mxu0 0.0
        %394 = vmatprep.subr.mxu0 0.0
        %395 = vmatpush2.msra.mxu0 0.0
        %396 = vmatprep.subr.mxu0 0.0
        %397 = vmatpush2.msra.mxu0 0.0
        %398 = vmatprep.subr.mxu0 0.0
        %399 = vmatpush2.msra.mxu0 0.0
        %400 = vmatprep.subr.mxu0 0.0
        %401 = vmatpush2.msra.mxu0 0.0
        %402 = vmatprep.subr.mxu0 0.0
        %403 = vmatpush2.msra.mxu0 0.0
        %404 = vmatprep.mubr.f32.mxu0 0.0
        %405 = vmatmul.mubr.f32.gmra.mxu0 %v338
        %v406 = vpop.f32.mrf.mxu0
        %v407 = vadd.f32 %v334, %v406
        %v408 = vpop.f32.mrf.mxu0
        %v409 = vadd.f32 %v334, %v408
        %410 = vdwg.mxu0
        %vm411 = vcmp.gt.f32.partialorder %v407, 0.0
        %vm412 = vcmp.gt.f32.partialorder %v409, 0.0
        %v413 = vmul.f32 %v407, 0.1
        %v414 = vmul.f32 %v409, 0.1
        %v415 = vsel %vm411, %v407, %v413
        %v416 = vsel %vm412, %v409, %v414
        %v417 = vld [vmem:[%s3] sm:$0xff]
        %419 = vset.pattern.permute.xlu0 0
        %420 = vperm.xlu0 %419, %v417
        %v421 = vpop.permute.xlu0 %420
        %v423 = vmul.f32 %v415, %v421
        %v424 = vmul.f32 %v416, %v421
        %v425 = vrot.slane %v423, 4
        %v426 = vadd.f32 %v423, %v425
        %v427 = vrot.slane %v426, 2
        %v428 = vadd.f32 %v426, %v427
        %v429 = vrot.slane %v428, 1
        %v430 = vadd.f32 %v428, %v429
        %vm431 = vcmask 130048
        %v432 = vsel %vm431, %v424, 0.0
        %v433 = vrot.slane %v432, 4
        %v434 = vadd.f32 %v432, %v433
        %v435 = vrot.slane %v434, 2
        %v436 = vadd.f32 %v434, %v435
        %v437 = vrot.slane %v436, 1
        %v438 = vadd.f32 %v436, %v437
        %v439 = vld [vmem:[#allocation2] sm:$0x1]
        %441 = vset.pattern.permute.xlu0 0
        %442 = vperm.xlu0 %441, %v439
        %v443 = vpop.permute.xlu0 %442
        %v445 = vlaneseq
        %v446 = vshrl.u32 %v445, 7
        %v447 = vsub.s32 0, %v446
        %v448 = vrot.slane %v443, %v447
        %v449 = vadd.f32 %v430, %v448
        %v450 = vadd.f32 %v438, %v448
        %v451 = vxor.u32 %v449, 2147483648
        %v452 = vxor.u32 %v450, 2147483648
        %v453 = vmul.f32 %v451, 1.442695
        %v454 = vpow.pop %v453
        %v455 = vmul.f32 %v452, 1.442695
        %v456 = vpow.pop %v455
        %v457 = vadd.f32 %v454, 1.0
        %v458 = vadd.f32 %v456, 1.0
        %v459 = vrcp.pop %v457
        %v460 = vmul.f32 1.0, %v459
        %v461 = vrcp.pop %v458
        %v462 = vmul.f32 1.0, %v461
        %v463 = vld [vmem:[%s234] sm:$0xf]
        %v464 = vld [vmem:[%s234 + $0x8] sm:$0xf]
        %467 = vrot.lane.b32.xlu0 %v460, 19
        %v468 = vpop.permute.xlu0 %467
        %469 = vrot.lane.b32.xlu0 %v462, 19
        %v470 = vpop.permute.xlu0 %469
        %vm471 = vcmask 154624
        %v472 = vsel %vm471, %v468, %v470
        %v475 = vmul.f32 %v463, %v468
        %v476 = vmul.f32 %v464, %v472
        %v479 = vcombine.low %v475, %v476
        %480 = vrot.lane.b32.xlu0 %v479, 109
        %v481 = vpop.permute.xlu0 %480
        %v482 = vrot.slane %v481, 4
        %v483 = vsel %vm293, %v481, %v482
        %vm485 = vcmask 1043456
        %vm486 = vcmask 130052
        %vm487 = vmor %vm486, %vm485
        %488 = vst.msk [vmem:[%s260] sm:$0xff] %vm487, %v483
        %s489 = sand.u32 %s158, 1
        %s490 = scalar_lea.sflag [#allocation5], %s489
        %s491 = sand.u32 %s158, 1
        %s492 = smul.addr %s491, 8
        %s493 = scalar_lea.vmem [#allocation6], %s492
        // Predicated region
        $region45: #{tpu_custom_call.1} parent=39 // pred_check
          %p494 = pneg %p168
        $region46: #{tpu_custom_call.1} parent=39 // pred_check_branch
          %496 = sbr.rel (%p494) target = $region48
        $region47: #{tpu_custom_call.1} parent=39 // pred_region
          %s498 = ssub.s32 128, 128
          %499 = vsyncadd %s490, %s498
          %s500 = smul.addr %s29, 2
          %s501 = smul.addr %s28, 4
          %s502 = sadd.s32 %s500, %s501
          %s503 = smul.addr %s502, 64
          %s504 = scalar_lea.hbm %s5, %s503
          %s506 = sshll.u32 %s493, 4
          %s507 = int_to_ptr.vmem [resolvable:$true] %s506
          %509 = dma.vmem_to_hbm [thread:$0]  %s507, 128, %s504, %s490
        $region48: #{tpu_custom_call.1} parent=39 // pred_fallthru
          _
      $region40: #{tpu_custom_call.1} parent=5 // pred_fallthru
        _
      %p510 = scmp.le.s32.totalorder 2, %s19
      // Predicated region
      $region49: #{tpu_custom_call.1} parent=5 // pred_check
        %p511 = pneg %p510
      $region50: #{tpu_custom_call.1} parent=5 // pred_check_branch
        %513 = sbr.rel (%p511) target = $region52
      $region51: #{tpu_custom_call.1} parent=5 // pred_region
        %s514 = ssub.s32 %s19, 2
        // Predicated region
        $region53: #{tpu_custom_call.1} parent=51 // pred_check
          %p515 = pneg %p174
        $region54: #{tpu_custom_call.1} parent=51 // pred_check_branch
          %517 = sbr.rel (%p515) target = $region56
        $region55: #{tpu_custom_call.1} parent=51 // pred_region
          %s518 = sand.u32 %s159, 1
          %s519 = scalar_lea.sflag [#allocation5], %s518
          %s520 = sand.u32 %s159, 1
          %s521 = smul.addr %s520, 8
          %s522 = scalar_lea.vmem [#allocation6], %s521
          %523 = dma.done %s519, 128
        $region56: #{tpu_custom_call.1} parent=51 // pred_fallthru
          _
      $region52: #{tpu_custom_call.1} parent=5 // pred_fallthru
        _
    $region6: #{tpu_custom_call.1} parent=1 // loop_footer
      %s23 = sadd.s32 1, %s19
    $region7: #{tpu_custom_call.1} parent=1 // loop_footer_branch
      %18 = sbr.rel target = $region3
    $region8: #{tpu_custom_call.1} parent=1 // loop_exit
      _
    %524 = vsyncpa [#allocation4], 1
    %s525 = scalar_lea.sflag [#allocation4], 1
    %526 = vsyncpa %s525, 1
    %527 = vsyncpa [#allocation5], 1
    %s528 = scalar_lea.sflag [#allocation5], 1
    %529 = vsyncpa %s528, 1

</llo_original>
